<compile_context>
chip_gen: v7x
topology: tpu7x:2x2x1
jax: 0.10.0
libtpu: 0.0.40
codegen_flags: <defaults>
</compile_context>

<pallas_src>
import functools

import jax
import jax.numpy as jnp
import numpy as np
from jax.experimental import pallas as pl
from jax.experimental.pallas import tpu as pltpu


def _lstm2_step_kernel(xh0_ref, h1_ref, c0_ref, c1_ref,
                       w0_ref, b0_ref, w1_ref, b1_ref, out_ref):
    """Single-timestep 2-layer LSTM over a tile of flattened (pedestrian*batch) rows.

    Block shapes seen by the kernel (T = row tile):
      xh0_ref : (T, I+H)   -- [x | h_layer0] concatenated in the wrapper
      h1_ref  : (T, H)     -- layer-1 initial hidden
      c0_ref  : (T, H)     -- layer-0 initial cell
      c1_ref  : (T, H)     -- layer-1 initial cell
      w0_ref  : (I+H, 4H)  -- [Wih_l0; Whh_l0] pre-transposed/fused
      b0_ref  : (1, 4H)    -- b_ih_l0 + b_hh_l0
      w1_ref  : (2H, 4H)   -- [Wih_l1; Whh_l1]
      b1_ref  : (1, 4H)
      out_ref : (T, 4H)    -- packed [h0_new | h1_new | c0_new | c1_new] (lane-dense)
    """
    H = h1_ref.shape[-1]

    def cell(xh, c, w_ref, b_ref):
        # One fused MXU matmul per layer: (T, K) @ (K, 4H) -> (T, 4H).
        gates = (jnp.dot(xh, w_ref[...], preferred_element_type=jnp.float32)
                 + b_ref[...])
        # Full-width activations + one lane-mask select instead of 4 sub-vreg slices
        # feeding the EUP. Gate order is PyTorch's (i, f, g, o): lanes [2H,3H) are tanh.
        lane = jax.lax.broadcasted_iota(jnp.int32, gates.shape, dimension=1)
        is_tanh_lane = (lane >= 2 * H) & (lane < 3 * H)
        act = jnp.where(is_tanh_lane, jnp.tanh(gates), jax.nn.sigmoid(gates))
        i_g = act[:, 0 * H:1 * H]
        f_g = act[:, 1 * H:2 * H]
        g_g = act[:, 2 * H:3 * H]
        o_g = act[:, 3 * H:4 * H]
        c_new = f_g * c + i_g * g_g
        h_new = o_g * jnp.tanh(c_new)
        return h_new, c_new

    # Layer 0: input is [trace coords | h_l0] (concatenated in the wrapper).
    h0n, c0n = cell(xh0_ref[...], c0_ref[...], w0_ref, b0_ref)
    # Layer 1: input is [h_l0_new | h_l1].
    xh1 = jnp.concatenate([h0n, h1_ref[...]], axis=-1)
    h1n, c1n = cell(xh1, c1_ref[...], w1_ref, b1_ref)

    # Single lane-dense packed store (4H lanes).
    out_ref[...] = jnp.concatenate([h0n, h1n, c0n, c1n], axis=-1)


@functools.partial(jax.jit, static_argnames=("row_tile",))
def _encoder_lstm_forward(x_bpi, h0, c0, w0, b0, w1, b1, *, row_tile):
    """x_bpi: (B, P, I); h0/c0: (P, L, B, H). Returns stacked outputs."""
    B, P, I = x_bpi.shape
    _, L, _, H = h0.shape
    assert L == 2
    rows = P * B
    rows_pad = row_tile * pl.cdiv(rows, row_tile)

    # Flatten pedestrians into the batch: row index = p * B + b.
    x_flat = jnp.transpose(x_bpi, (1, 0, 2)).reshape(rows, I)       # (rows, I)
    h_flat = jnp.transpose(h0, (1, 0, 2, 3)).reshape(L, rows, H)    # (L, rows, H)
    c_flat = jnp.transpose(c0, (1, 0, 2, 3)).reshape(L, rows, H)

    pad = rows_pad - rows
    if pad:
        x_flat = jnp.pad(x_flat, ((0, pad), (0, 0)))
        h_flat = jnp.pad(h_flat, ((0, 0), (0, pad), (0, 0)))
        c_flat = jnp.pad(c_flat, ((0, 0), (0, pad), (0, 0)))

    xh0 = jnp.concatenate([x_flat, h_flat[0]], axis=-1)             # (rows_pad, I+H)
    h1_in = h_flat[1]
    c0_in = c_flat[0]
    c1_in = c_flat[1]

    grid = (rows_pad // row_tile,)
    grid_spec = pltpu.PrefetchScalarGridSpec(
        num_scalar_prefetch=0,
        grid=grid,
        in_specs=[
            pl.BlockSpec((row_tile, I + H), lambda r: (r, 0)),   # [x | h_l0]
            pl.BlockSpec((row_tile, H), lambda r: (r, 0)),       # h_l1
            pl.BlockSpec((row_tile, H), lambda r: (r, 0)),       # c_l0
            pl.BlockSpec((row_tile, H), lambda r: (r, 0)),       # c_l1
            pl.BlockSpec((I + H, 4 * H), lambda r: (0, 0)),      # fused W layer 0
            pl.BlockSpec((1, 4 * H), lambda r: (0, 0)),          # bias layer 0
            pl.BlockSpec((2 * H, 4 * H), lambda r: (0, 0)),      # fused W layer 1
            pl.BlockSpec((1, 4 * H), lambda r: (0, 0)),          # bias layer 1
        ],
        out_specs=pl.BlockSpec((row_tile, 4 * H), lambda r: (r, 0)),
    )

    packed = pl.pallas_call(
        _lstm2_step_kernel,
        grid_spec=grid_spec,
        out_shape=jax.ShapeDtypeStruct((rows_pad, 4 * H), jnp.float32),
        compiler_params=pltpu.CompilerParams(
            dimension_semantics=("parallel",)),   # independent row tiles (v7x 2 TCs)
    )(xh0, h1_in, c0_in, c1_in, w0, b0, w1, b1)

    packed = packed[:rows]
    h0n = packed[:, 0 * H:1 * H].reshape(P, B, H)
    h1n = packed[:, 1 * H:2 * H].reshape(P, B, H)
    c0n = packed[:, 2 * H:3 * H].reshape(P, B, H)
    c1n = packed[:, 3 * H:4 * H].reshape(P, B, H)

    hn = jnp.stack([h0n, h1n], axis=1)                 # (P, L, B, H)
    cn = jnp.stack([c0n, c1n], axis=1)                 # (P, L, B, H)
    output_traces = jnp.transpose(h1n, (1, 0, 2))      # (B, P, H)
    cell_states = jnp.transpose(c1n, (1, 0, 2))        # (B, P, H)
    return output_traces, hn, cn, cell_states


class EncoderNetLSTMPallas:
    """JAX/Pallas equivalent of models.backbone.SR_LSTM.EncoderNetLSTM."""

    def __init__(self, pedestrian_num, input_size, hidden_size, n_layers=2, seed=0):
        assert n_layers == 2, "kernel implements the default n_layers=2"
        self.pedestrian_num = pedestrian_num
        self.input_size = input_size
        self.hidden_size = hidden_size
        self.n_layers = n_layers

        # Deterministic PyTorch-style init: U(-1/sqrt(H), 1/sqrt(H)) for every param.
        k = 1.0 / np.sqrt(hidden_size)
        keys = jax.random.split(jax.random.PRNGKey(seed), 8)
        H, I = hidden_size, input_size

        def u(key, shape):
            return jax.random.uniform(key, shape, jnp.float32, -k, k)

        w_ih_l0 = u(keys[0], (4 * H, I))
        w_hh_l0 = u(keys[1], (4 * H, H))
        b_ih_l0 = u(keys[2], (4 * H,))
        b_hh_l0 = u(keys[3], (4 * H,))
        w_ih_l1 = u(keys[4], (4 * H, H))
        w_hh_l1 = u(keys[5], (4 * H, H))
        b_ih_l1 = u(keys[6], (4 * H,))
        b_hh_l1 = u(keys[7], (4 * H,))

        # Fuse [Wih; Whh] (pre-transposed for x @ W) and fold the two bias vectors.
        self.w0 = jnp.concatenate([w_ih_l0.T, w_hh_l0.T], axis=0)   # (I+H, 4H)
        self.b0 = (b_ih_l0 + b_hh_l0)[None, :]                      # (1, 4H)
        self.w1 = jnp.concatenate([w_ih_l1.T, w_hh_l1.T], axis=0)   # (2H, 4H)
        self.b1 = (b_ih_l1 + b_hh_l1)[None, :]                      # (1, 4H)

    def init_hidden(self, batch_size):
        z = jnp.zeros((self.n_layers, batch_size, self.hidden_size), jnp.float32)
        return [[z, z] for _ in range(self.pedestrian_num)]

    @staticmethod
    def _row_tile(rows):
        if rows >= 256:
            return 256
        return ((rows + 7) // 8) * 8

    def __call__(self, input_traces, hidden):
        """input_traces: (B, P, I); hidden: list of P [h0, c0], each (L, B, H)."""
        B, P, I = input_traces.shape
        assert P == self.pedestrian_num and I == self.input_size

        h0 = jnp.stack([hidden[p][0] for p in range(P)], axis=0)    # (P, L, B, H)
        c0 = jnp.stack([hidden[p][1] for p in range(P)], axis=0)    # (P, L, B, H)

        output_traces, hn, cn, cell_states = _encoder_lstm_forward(
            input_traces, h0, c0,
            self.w0, self.b0, self.w1, self.b1,
            row_tile=self._row_tile(P * B))

        # PyTorch-compatible return structure (list of per-pedestrian (h_n, c_n)).
        next_hidden_list = [(hn[p], cn[p]) for p in range(P)]
        return output_traces, next_hidden_list, cell_states


def _reference_forward(model, input_traces, hidden):
    """Pure-JAX reference implementing the exact PyTorch LSTM semantics."""
    B, P, I = input_traces.shape
    H = model.hidden_size
    hp = jax.lax.Precision.HIGHEST

    def cell(xh, c, w, b):
        gates = jnp.dot(xh, w, precision=hp) + b
        i_g = jax.nn.sigmoid(gates[:, 0 * H:1 * H])
        f_g = jax.nn.sigmoid(gates[:, 1 * H:2 * H])
        g_g = jnp.tanh(gates[:, 2 * H:3 * H])
        o_g = jax.nn.sigmoid(gates[:, 3 * H:4 * H])
        c_new = f_g * c + i_g * g_g
        return o_g * jnp.tanh(c_new), c_new

    outs, cells, hiddens = [], [], []
    for p in range(P):
        x = input_traces[:, p, :]
        h0, c0 = hidden[p][0], hidden[p][1]
        h0n, c0n = cell(jnp.concatenate([x, h0[0]], -1), c0[0], model.w0, model.b0)
        h1n, c1n = cell(jnp.concatenate([h0n, h0[1]], -1), c0[1], model.w1, model.b1)
        outs.append(h1n)
        cells.append(c1n)
        hiddens.append((jnp.stack([h0n, h1n]), jnp.stack([c0n, c1n])))
    return jnp.stack(outs, 1), hiddens, jnp.stack(cells, 1)


if __name__ == "__main__":
    # Small shapes consistent with SR-LSTM trajectory encoding.
    batch = 2
    pedestrian_num = 4
    input_size = 2       # (x, y) coordinates
    hidden_size = 32
    n_layers = 2

    model = EncoderNetLSTMPallas(pedestrian_num, input_size, hidden_size,
                                 n_layers=n_layers, seed=0)

    key = jax.random.PRNGKey(0)
    k_x, k_h, k_c = jax.random.split(key, 3)
    input_traces = jax.random.normal(k_x, (batch, pedestrian_num, input_size),
                                     jnp.float32)
    # Non-zero hidden states so both the recurrent path and cell carry are exercised.
    h_all = jax.random.normal(
        k_h, (pedestrian_num, n_layers, batch, hidden_size), jnp.float32) * 0.1
    c_all = jax.random.normal(
        k_c, (pedestrian_num, n_layers, batch, hidden_size), jnp.float32) * 0.1
    hidden = [[h_all[p], c_all[p]] for p in range(pedestrian_num)]

    output_traces, next_hidden_list, cell_states = model(input_traces, hidden)
    jax.block_until_ready(output_traces)
    jax.block_until_ready(cell_states)
    for h_n, c_n in next_hidden_list:
        jax.block_until_ready(h_n)
        jax.block_until_ready(c_n)

    # Sanity check against a pure-JAX reference of the PyTorch semantics.
    ref_out, ref_hidden, ref_cells = _reference_forward(model, input_traces, hidden)
    np.testing.assert_allclose(np.asarray(output_traces), np.asarray(ref_out),
                               rtol=1e-5, atol=1e-5)
    np.testing.assert_allclose(np.asarray(cell_states), np.asarray(ref_cells),
                               rtol=1e-5, atol=1e-5)
    for p in range(pedestrian_num):
        np.testing.assert_allclose(np.asarray(next_hidden_list[p][0]),
                                   np.asarray(ref_hidden[p][0]), rtol=1e-5, atol=1e-5)
        np.testing.assert_allclose(np.asarray(next_hidden_list[p][1]),
                                   np.asarray(ref_hidden[p][1]), rtol=1e-5, atol=1e-5)

    assert output_traces.shape == (batch, pedestrian_num, hidden_size)
    assert cell_states.shape == (batch, pedestrian_num, hidden_size)
    assert len(next_hidden_list) == pedestrian_num
    assert next_hidden_list[0][0].shape == (n_layers, batch, hidden_size)

    print("KERNEL_OK")
</pallas_src>

<mosaic_0001>
module attributes {stable_mosaic.version = 11 : i64} {
  func.func @_lstm2_step_kernel(%arg0: i32, %arg1: memref<8x34xf32, #tpu.memory_space<vmem>>, %arg2: memref<8x32xf32, #tpu.memory_space<vmem>>, %arg3: memref<8x32xf32, #tpu.memory_space<vmem>>, %arg4: memref<8x32xf32, #tpu.memory_space<vmem>>, %arg5: memref<34x128xf32, #tpu.memory_space<vmem>>, %arg6: memref<1x128xf32, #tpu.memory_space<vmem>>, %arg7: memref<64x128xf32, #tpu.memory_space<vmem>>, %arg8: memref<1x128xf32, #tpu.memory_space<vmem>>, %arg9: memref<8x128xf32, #tpu.memory_space<vmem>>) attributes {dimension_semantics = [#tpu.dimension_semantics<parallel>], iteration_bounds = array<i64: 1>, scalar_prefetch = 0 : i64, scratch_operands = 0 : i64, tpu.core_type = #tpu.core_type<tc>, window_params = [{transform_indices = @transform_0, window_bounds = array<i64: 8, 34>}, {transform_indices = @transform_1, window_bounds = array<i64: 8, 32>}, {transform_indices = @transform_2, window_bounds = array<i64: 8, 32>}, {transform_indices = @transform_3, window_bounds = array<i64: 8, 32>}, {pipeline_mode = #tpu.pipeline_mode<synchronous>, transform_indices = @transform_4, window_bounds = array<i64: 34, 128>}, {pipeline_mode = #tpu.pipeline_mode<synchronous>, transform_indices = @transform_5, window_bounds = array<i64: 1, 128>}, {pipeline_mode = #tpu.pipeline_mode<synchronous>, transform_indices = @transform_6, window_bounds = array<i64: 64, 128>}, {pipeline_mode = #tpu.pipeline_mode<synchronous>, transform_indices = @transform_7, window_bounds = array<i64: 1, 128>}, {transform_indices = @transform_8, window_bounds = array<i64: 8, 128>}]} {
    %c0 = arith.constant 0 : index
    %c0_0 = arith.constant 0 : index
    %0 = vector.load %arg1[%c0, %c0_0] : memref<8x34xf32, #tpu.memory_space<vmem>>, vector<8x34xf32>
    %c0_1 = arith.constant 0 : index
    %c0_2 = arith.constant 0 : index
    %1 = vector.load %arg3[%c0_1, %c0_2] : memref<8x32xf32, #tpu.memory_space<vmem>>, vector<8x32xf32>
    %c0_3 = arith.constant 0 : index
    %c0_4 = arith.constant 0 : index
    %2 = vector.load %arg5[%c0_3, %c0_4] : memref<34x128xf32, #tpu.memory_space<vmem>>, vector<34x128xf32>
    %cst = arith.constant dense<0.000000e+00> : vector<8x128xf32>
    %3 = tpu.matmul %0, %2, %cst {dimension_numbers = #tpu.dot_dimension_numbers<[1], [0], [0], [1], [0, 0, 1, 1], [], []>} : vector<8x34xf32>, vector<34x128xf32>, vector<8x128xf32> -> vector<8x128xf32>
    %c0_5 = arith.constant 0 : index
    %c0_6 = arith.constant 0 : index
    %4 = vector.load %arg6[%c0_5, %c0_6] : memref<1x128xf32, #tpu.memory_space<vmem>>, vector<1x128xf32>
    %5 = vector.broadcast %4 : vector<1x128xf32> to vector<8x128xf32>
    %6 = arith.addf %3, %5 : vector<8x128xf32>
    %7 = tpu.iota {dimensions = array<i32: 1>} : vector<8x128xi32>
    %c64_i32 = arith.constant 64 : i32
    %8 = vector.broadcast %c64_i32 : i32 to vector<8x128xi32>
    %9 = arith.cmpi sge, %7, %8 : vector<8x128xi32>
    %c96_i32 = arith.constant 96 : i32
    %10 = vector.broadcast %c96_i32 : i32 to vector<8x128xi32>
    %11 = arith.cmpi slt, %7, %10 : vector<8x128xi32>
    %12 = arith.andi %9, %11 : vector<8x128xi1>
    %13 = math.tanh %6 : vector<8x128xf32>
    %14 = arith.negf %6 : vector<8x128xf32>
    %15 = math.exp %14 : vector<8x128xf32>
    %cst_7 = arith.constant 1.000000e+00 : f32
    %16 = vector.broadcast %cst_7 : f32 to vector<8x128xf32>
    %17 = arith.addf %16, %15 : vector<8x128xf32>
    %18 = arith.divf %16, %17 : vector<8x128xf32>
    %19 = arith.select %12, %13, %18 : vector<8x128xi1>, vector<8x128xf32>
    %20 = vector.extract_strided_slice %19 {offsets = [0, 0], sizes = [8, 32], strides = [1, 1]} : vector<8x128xf32> to vector<8x32xf32>
    %21 = vector.extract_strided_slice %19 {offsets = [0, 32], sizes = [8, 32], strides = [1, 1]} : vector<8x128xf32> to vector<8x32xf32>
    %22 = vector.extract_strided_slice %19 {offsets = [0, 64], sizes = [8, 32], strides = [1, 1]} : vector<8x128xf32> to vector<8x32xf32>
    %23 = vector.extract_strided_slice %19 {offsets = [0, 96], sizes = [8, 32], strides = [1, 1]} : vector<8x128xf32> to vector<8x32xf32>
    %24 = arith.mulf %21, %1 : vector<8x32xf32>
    %25 = arith.mulf %20, %22 : vector<8x32xf32>
    %26 = arith.addf %24, %25 : vector<8x32xf32>
    %27 = math.tanh %26 : vector<8x32xf32>
    %28 = arith.mulf %23, %27 : vector<8x32xf32>
    %c0_8 = arith.constant 0 : index
    %c0_9 = arith.constant 0 : index
    %29 = vector.load %arg2[%c0_8, %c0_9] : memref<8x32xf32, #tpu.memory_space<vmem>>, vector<8x32xf32>
    %30 = tpu.concatenate %28, %29 in 1 : vector<8x32xf32>, vector<8x32xf32> -> vector<8x64xf32>
    %c0_10 = arith.constant 0 : index
    %c0_11 = arith.constant 0 : index
    %31 = vector.load %arg4[%c0_10, %c0_11] : memref<8x32xf32, #tpu.memory_space<vmem>>, vector<8x32xf32>
    %c0_12 = arith.constant 0 : index
    %c0_13 = arith.constant 0 : index
    %32 = vector.load %arg7[%c0_12, %c0_13] : memref<64x128xf32, #tpu.memory_space<vmem>>, vector<64x128xf32>
    %cst_14 = arith.constant dense<0.000000e+00> : vector<8x128xf32>
    %33 = tpu.matmul %30, %32, %cst_14 {dimension_numbers = #tpu.dot_dimension_numbers<[1], [0], [0], [1], [0, 0, 1, 1], [], []>} : vector<8x64xf32>, vector<64x128xf32>, vector<8x128xf32> -> vector<8x128xf32>
    %c0_15 = arith.constant 0 : index
    %c0_16 = arith.constant 0 : index
    %34 = vector.load %arg8[%c0_15, %c0_16] : memref<1x128xf32, #tpu.memory_space<vmem>>, vector<1x128xf32>
    %35 = vector.broadcast %34 : vector<1x128xf32> to vector<8x128xf32>
    %36 = arith.addf %33, %35 : vector<8x128xf32>
    %37 = tpu.iota {dimensions = array<i32: 1>} : vector<8x128xi32>
    %c64_i32_17 = arith.constant 64 : i32
    %38 = vector.broadcast %c64_i32_17 : i32 to vector<8x128xi32>
    %39 = arith.cmpi sge, %37, %38 : vector<8x128xi32>
    %c96_i32_18 = arith.constant 96 : i32
    %40 = vector.broadcast %c96_i32_18 : i32 to vector<8x128xi32>
    %41 = arith.cmpi slt, %37, %40 : vector<8x128xi32>
    %42 = arith.andi %39, %41 : vector<8x128xi1>
    %43 = math.tanh %36 : vector<8x128xf32>
    %44 = arith.negf %36 : vector<8x128xf32>
    %45 = math.exp %44 : vector<8x128xf32>
    %cst_19 = arith.constant 1.000000e+00 : f32
    %46 = vector.broadcast %cst_19 : f32 to vector<8x128xf32>
    %47 = arith.addf %46, %45 : vector<8x128xf32>
    %48 = arith.divf %46, %47 : vector<8x128xf32>
    %49 = arith.select %42, %43, %48 : vector<8x128xi1>, vector<8x128xf32>
    %50 = vector.extract_strided_slice %49 {offsets = [0, 0], sizes = [8, 32], strides = [1, 1]} : vector<8x128xf32> to vector<8x32xf32>
    %51 = vector.extract_strided_slice %49 {offsets = [0, 32], sizes = [8, 32], strides = [1, 1]} : vector<8x128xf32> to vector<8x32xf32>
    %52 = vector.extract_strided_slice %49 {offsets = [0, 64], sizes = [8, 32], strides = [1, 1]} : vector<8x128xf32> to vector<8x32xf32>
    %53 = vector.extract_strided_slice %49 {offsets = [0, 96], sizes = [8, 32], strides = [1, 1]} : vector<8x128xf32> to vector<8x32xf32>
    %54 = arith.mulf %51, %31 : vector<8x32xf32>
    %55 = arith.mulf %50, %52 : vector<8x32xf32>
    %56 = arith.addf %54, %55 : vector<8x32xf32>
    %57 = math.tanh %56 : vector<8x32xf32>
    %58 = arith.mulf %53, %57 : vector<8x32xf32>
    %59 = tpu.concatenate %28, %58, %26, %56 in 1 : vector<8x32xf32>, vector<8x32xf32>, vector<8x32xf32>, vector<8x32xf32> -> vector<8x128xf32>
    %c0_20 = arith.constant 0 : index
    %c0_21 = arith.constant 0 : index
    %60 = vector.load %arg9[%c0_20, %c0_21] : memref<8x128xf32, #tpu.memory_space<vmem>>, vector<8x128xf32>
    tpu.vector_store %arg9[%c0_20, %c0_21], %59 {strides = array<i32>} : memref<8x128xf32, #tpu.memory_space<vmem>>, vector<8x128xf32>,
    return
  }
  func.func @transform_0(%arg0: i32) -> (i32, i32) {
    %c0_i32 = arith.constant 0 : i32
    %c0_i32_0 = arith.constant 0 : i32
    return %arg0, %c0_i32 : i32, i32
  }
  func.func @transform_1(%arg0: i32) -> (i32, i32) {
    %c0_i32 = arith.constant 0 : i32
    %c0_i32_0 = arith.constant 0 : i32
    return %arg0, %c0_i32 : i32, i32
  }
  func.func @transform_2(%arg0: i32) -> (i32, i32) {
    %c0_i32 = arith.constant 0 : i32
    %c0_i32_0 = arith.constant 0 : i32
    return %arg0, %c0_i32 : i32, i32
  }
  func.func @transform_3(%arg0: i32) -> (i32, i32) {
    %c0_i32 = arith.constant 0 : i32
    %c0_i32_0 = arith.constant 0 : i32
    return %arg0, %c0_i32 : i32, i32
  }
  func.func @transform_4(%arg0: i32) -> (i32, i32) {
    %c0_i32 = arith.constant 0 : i32
    %c0_i32_0 = arith.constant 0 : i32
    %c0_i32_1 = arith.constant 0 : i32
    return %c0_i32, %c0_i32_0 : i32, i32
  }
  func.func @transform_5(%arg0: i32) -> (i32, i32) {
    %c0_i32 = arith.constant 0 : i32
    %c0_i32_0 = arith.constant 0 : i32
    %c0_i32_1 = arith.constant 0 : i32
    return %c0_i32, %c0_i32_0 : i32, i32
  }
  func.func @transform_6(%arg0: i32) -> (i32, i32) {
    %c0_i32 = arith.constant 0 : i32
    %c0_i32_0 = arith.constant 0 : i32
    %c0_i32_1 = arith.constant 0 : i32
    return %c0_i32, %c0_i32_0 : i32, i32
  }
  func.func @transform_7(%arg0: i32) -> (i32, i32) {
    %c0_i32 = arith.constant 0 : i32
    %c0_i32_0 = arith.constant 0 : i32
    %c0_i32_1 = arith.constant 0 : i32
    return %c0_i32, %c0_i32_0 : i32, i32
  }
  func.func @transform_8(%arg0: i32) -> (i32, i32) {
    %c0_i32 = arith.constant 0 : i32
    %c0_i32_0 = arith.constant 0 : i32
    return %arg0, %c0_i32 : i32, i32
  }
}

</mosaic_0001>

<llo_original>
// kernel: _encoder_lstm_forward.1
$region0: #{_encoder_lstm_forward.1}
  #allocation0 [shape = 'u32[]', space=smem, size = 0x4, offset = 0x4, fixed_abs, tag = 'smem constant byte address 0x4 - core index']
  #allocation1 [shape = 'u32[144,128]{1,0:T(1,128)}', space=vmem, size = 0x12000, scoped, tag = 'internal scratch']
  %s0 = inlined_call_operand.vmem [shape: f32[8,34], index: 0, kind: input, shape index: {}]
  %s1 = inlined_call_operand.vmem [shape: f32[8,32], index: 1, kind: input, shape index: {}]
  %s2 = inlined_call_operand.vmem [shape: f32[8,32], index: 2, kind: input, shape index: {}]
  %s3 = inlined_call_operand.vmem [shape: f32[8,32], index: 3, kind: input, shape index: {}]
  %s4 = inlined_call_operand.vmem [shape: f32[34,128], index: 4, kind: input, shape index: {}]
  %s5 = inlined_call_operand.vmem [shape: f32[1,128], index: 5, kind: input, shape index: {}]
  %s6 = inlined_call_operand.vmem [shape: f32[64,128], index: 6, kind: input, shape index: {}]
  %s7 = inlined_call_operand.vmem [shape: f32[1,128], index: 7, kind: input, shape index: {}]
  %s8 = inlined_call_operand.vmem [shape: f32[8,128], index: 8, kind: output, shape index: {}]
  %s9 = sld [smem:[#allocation0]]
  $region42: #{_encoder_lstm_forward.1} parent=0
    _
  %s11 = ssub.s32 1, %s9
  %s12 = scalar_select 0, %s11, %s9
  // Predicated region
  $region2: #{_encoder_lstm_forward.1} parent=0 // pred_check
    _
  $region3: #{_encoder_lstm_forward.1} parent=0 // pred_check_branch
    %14 = sbr.rel (0) target = $region5
  $region4: #{_encoder_lstm_forward.1} parent=0 // pred_region
    _
  $region5: #{_encoder_lstm_forward.1} parent=0 // pred_fallthru
    _
  // Predicated region
  $region6: #{_encoder_lstm_forward.1} parent=0 // pred_check
    _
  $region7: #{_encoder_lstm_forward.1} parent=0 // pred_check_branch
    %16 = sbr.rel (0) target = $region9
  $region8: #{_encoder_lstm_forward.1} parent=0 // pred_region
    _
  $region9: #{_encoder_lstm_forward.1} parent=0 // pred_fallthru
    _
  // Predicated region
  $region10: #{_encoder_lstm_forward.1} parent=0 // pred_check
    _
  $region11: #{_encoder_lstm_forward.1} parent=0 // pred_check_branch
    %18 = sbr.rel (0) target = $region13
  $region12: #{_encoder_lstm_forward.1} parent=0 // pred_region
    _
  $region13: #{_encoder_lstm_forward.1} parent=0 // pred_fallthru
    _
  // Predicated region
  $region14: #{_encoder_lstm_forward.1} parent=0 // pred_check
    _
  $region15: #{_encoder_lstm_forward.1} parent=0 // pred_check_branch
    %20 = sbr.rel (0) target = $region17
  $region16: #{_encoder_lstm_forward.1} parent=0 // pred_region
    _
  $region17: #{_encoder_lstm_forward.1} parent=0 // pred_fallthru
    _
  // Predicated region
  $region18: #{_encoder_lstm_forward.1} parent=0 // pred_check
    _
  $region19: #{_encoder_lstm_forward.1} parent=0 // pred_check_branch
    %22 = sbr.rel (0) target = $region21
  $region20: #{_encoder_lstm_forward.1} parent=0 // pred_region
    _
  $region21: #{_encoder_lstm_forward.1} parent=0 // pred_fallthru
    _
  // Predicated region
  $region22: #{_encoder_lstm_forward.1} parent=0 // pred_check
    _
  $region23: #{_encoder_lstm_forward.1} parent=0 // pred_check_branch
    %24 = sbr.rel (0) target = $region25
  $region24: #{_encoder_lstm_forward.1} parent=0 // pred_region
    _
  $region25: #{_encoder_lstm_forward.1} parent=0 // pred_fallthru
    _
  // Predicated region
  $region26: #{_encoder_lstm_forward.1} parent=0 // pred_check
    _
  $region27: #{_encoder_lstm_forward.1} parent=0 // pred_check_branch
    %26 = sbr.rel (0) target = $region29
  $region28: #{_encoder_lstm_forward.1} parent=0 // pred_region
    _
  $region29: #{_encoder_lstm_forward.1} parent=0 // pred_fallthru
    _
  // Predicated region
  $region30: #{_encoder_lstm_forward.1} parent=0 // pred_check
    _
  $region31: #{_encoder_lstm_forward.1} parent=0 // pred_check_branch
    %28 = sbr.rel (0) target = $region33
  $region32: #{_encoder_lstm_forward.1} parent=0 // pred_region
    _
  $region33: #{_encoder_lstm_forward.1} parent=0 // pred_fallthru
    _
  %v29 = vld [vmem:[%s0] sm:$0xff]
  %v30 = vld [vmem:[%s2] sm:$0xff]
  %v31 = vld [vmem:[%s4] sm:$0xff]
  %v32 = vld [vmem:[%s4 + $0x8] sm:$0xff]
  %v33 = vld [vmem:[%s4 + $0x10] sm:$0xff]
  %v34 = vld [vmem:[%s4 + $0x18] sm:$0xff]
  %v35 = vld [vmem:[%s4 + $0x20] sm:$0x3]
  %v36 = vld [vmem:[%s5] sm:$0x1]
  %v38 = vlaneseq
  %v39 = vshrl.u32 %v38, 7
  %v40 = vsub.s32 0, %v39
  %v41 = vrot.slane %v36, %v40
  %vm43 = vcmask 277504
  %v45 = vsel %vm43, %v29, 0
  %vm47 = vcmask 1041408
  %v49 = vsel %vm47, %v35, 0
  %51 = vmatprep.subr.mxu0 0.0
  %52 = vmatpush1.msra.mxu0 %v31
  %53 = vmatprep.subr.mxu0 0.0
  %54 = vmatpush1.msra.mxu0 %v32
  %55 = vmatprep.subr.mxu0 0.0
  %56 = vmatpush1.msra.mxu0 %v33
  %57 = vmatprep.subr.mxu0 0.0
  %58 = vmatpush1.msra.mxu0 %v34
  %59 = vmatprep.subr.mxu0 0.0
  %60 = vmatpush1.msra.mxu0 %v49
  %61 = vmatprep.subr.mxu0 0.0
  %62 = vmatpush1.msra.mxu0 0.0
  %63 = vmatprep.subr.mxu0 0.0
  %64 = vmatpush1.msra.mxu0 0.0
  %65 = vmatprep.subr.mxu0 0.0
  %66 = vmatpush1.msra.mxu0 0.0
  %67 = vmatprep.subr.mxu0 0.0
  %68 = vmatpush1.msra.mxu0 0.0
  %69 = vmatprep.subr.mxu0 0.0
  %70 = vmatpush1.msra.mxu0 0.0
  %71 = vmatprep.subr.mxu0 0.0
  %72 = vmatpush1.msra.mxu0 0.0
  %73 = vmatprep.subr.mxu0 0.0
  %74 = vmatpush1.msra.mxu0 0.0
  %75 = vmatprep.subr.mxu0 0.0
  %76 = vmatpush1.msra.mxu0 0.0
  %77 = vmatprep.subr.mxu0 0.0
  %78 = vmatpush1.msra.mxu0 0.0
  %79 = vmatprep.subr.mxu0 0.0
  %80 = vmatpush1.msra.mxu0 0.0
  %81 = vmatprep.subr.mxu0 0.0
  %82 = vmatpush1.msra.mxu0 0.0
  %83 = vmatprep.subr.mxu0 0.0
  %84 = vmatpush1.msra.mxu0 0.0
  %85 = vmatprep.subr.mxu0 0.0
  %86 = vmatpush1.msra.mxu0 0.0
  %87 = vmatprep.subr.mxu0 0.0
  %88 = vmatpush1.msra.mxu0 0.0
  %89 = vmatprep.subr.mxu0 0.0
  %90 = vmatpush1.msra.mxu0 0.0
  %91 = vmatprep.subr.mxu0 0.0
  %92 = vmatpush1.msra.mxu0 0.0
  %93 = vmatprep.subr.mxu0 0.0
  %94 = vmatpush1.msra.mxu0 0.0
  %95 = vmatprep.subr.mxu0 0.0
  %96 = vmatpush1.msra.mxu0 0.0
  %97 = vmatprep.subr.mxu0 0.0
  %98 = vmatpush1.msra.mxu0 0.0
  %99 = vmatprep.subr.mxu0 0.0
  %100 = vmatpush1.msra.mxu0 0.0
  %101 = vmatprep.subr.mxu0 0.0
  %102 = vmatpush1.msra.mxu0 0.0
  %103 = vmatprep.subr.mxu0 0.0
  %104 = vmatpush1.msra.mxu0 0.0
  %105 = vmatprep.subr.mxu0 0.0
  %106 = vmatpush1.msra.mxu0 0.0
  %107 = vmatprep.subr.mxu0 0.0
  %108 = vmatpush1.msra.mxu0 0.0
  %109 = vmatprep.subr.mxu0 0.0
  %110 = vmatpush1.msra.mxu0 0.0
  %111 = vmatprep.subr.mxu0 0.0
  %112 = vmatpush1.msra.mxu0 0.0
  %113 = vmatprep.subr.mxu0 0.0
  %114 = vmatpush1.msra.mxu0 0.0
  %115 = vmatprep.mubr.f32.mxu0 0.0
  %116 = vmatmul.mubr.f32.gmra.mrb[0].mxu0 %v45
  %v117 = vpop.f32.mrb[0].mxu0
  %v118 = vadd.f32 %v41, %v117
  %v119 = vpop.f32.mrb[0].mxu0
  %120 = vdwg.mxu0
  %v121 = vlaneseq
  %v122 = vand.u32 %v121, 127
  %vm123 = vcmp.ge.s32.totalorder %v122, 64
  %vm124 = vcmp.lt.s32.totalorder %v122, 96
  %vm125 = vmand %vm123, %vm124
  %v126 = vtanh.pop %v118
  %v127 = vxor.u32 %v118, 2147483648
  %v128 = vmul.f32 %v127, 1.442695
  %v129 = vpow.pop %v128
  %v130 = vadd.f32 %v129, 1.0
  %v131 = vrcp.pop %v130
  %v132 = vmul.f32 1.0, %v131
  %v133 = vsel %vm125, %v126, %v132
  %135 = vrot.lane.b32.xlu0 %v30, 32
  %v136 = vpop.permute.xlu0 %135
  %v138 = vmul.f32 %v133, %v136
  %140 = vrot.lane.b32.xlu0 %v133, 64
  %v141 = vpop.permute.xlu0 %140
  %v143 = vmul.f32 %v133, %v141
  %145 = vrot.lane.b32.xlu0 %v143, 32
  %v146 = vpop.permute.xlu0 %145
  %v148 = vadd.f32 %v138, %v146
  %v149 = vtanh.pop %v148
  %151 = vrot.lane.b32.xlu0 %v149, 64
  %v152 = vpop.permute.xlu0 %151
  %v154 = vmul.f32 %v133, %v152
  %v155 = vld [vmem:[%s1] sm:$0xff]
  %157 = vrot.lane.b32.xlu0 %v154, 32
  %v158 = vpop.permute.xlu0 %157
  %161 = vrot.lane.b32.xlu0 %v155, 32
  %v162 = vpop.permute.xlu0 %161
  %vm164 = vcmask 261120
  %v165 = vsel %vm164, %v158, %v162
  %v166 = vld [vmem:[%s3] sm:$0xff]
  %v167 = vld [vmem:[%s6] sm:$0xff]
  %v168 = vld [vmem:[%s6 + $0x8] sm:$0xff]
  %v169 = vld [vmem:[%s6 + $0x10] sm:$0xff]
  %v170 = vld [vmem:[%s6 + $0x18] sm:$0xff]
  %v171 = vld [vmem:[%s6 + $0x20] sm:$0xff]
  %v172 = vld [vmem:[%s6 + $0x28] sm:$0xff]
  %v173 = vld [vmem:[%s6 + $0x30] sm:$0xff]
  %v174 = vld [vmem:[%s6 + $0x38] sm:$0xff]
  %v175 = vld [vmem:[%s7] sm:$0x1]
  %v177 = vlaneseq
  %v178 = vshrl.u32 %v177, 7
  %v179 = vsub.s32 0, %v178
  %v180 = vrot.slane %v175, %v179
  %vm182 = vcmask 523264
  %v184 = vsel %vm182, %v165, 0
  %186 = vmatprep.subr.mxu0 0.0
  %187 = vmatpush1.msra.mxu0 %v167
  %188 = vmatprep.subr.mxu0 0.0
  %189 = vmatpush1.msra.mxu0 %v168
  %190 = vmatprep.subr.mxu0 0.0
  %191 = vmatpush1.msra.mxu0 %v169
  %192 = vmatprep.subr.mxu0 0.0
  %193 = vmatpush1.msra.mxu0 %v170
  %194 = vmatprep.subr.mxu0 0.0
  %195 = vmatpush1.msra.mxu0 %v171
  %196 = vmatprep.subr.mxu0 0.0
  %197 = vmatpush1.msra.mxu0 %v172
  %198 = vmatprep.subr.mxu0 0.0
  %199 = vmatpush1.msra.mxu0 %v173
  %200 = vmatprep.subr.mxu0 0.0
  %201 = vmatpush1.msra.mxu0 %v174
  %202 = vmatprep.subr.mxu0 0.0
  %203 = vmatpush1.msra.mxu0 0.0
  %204 = vmatprep.subr.mxu0 0.0
  %205 = vmatpush1.msra.mxu0 0.0
  %206 = vmatprep.subr.mxu0 0.0
  %207 = vmatpush1.msra.mxu0 0.0
  %208 = vmatprep.subr.mxu0 0.0
  %209 = vmatpush1.msra.mxu0 0.0
  %210 = vmatprep.subr.mxu0 0.0
  %211 = vmatpush1.msra.mxu0 0.0
  %212 = vmatprep.subr.mxu0 0.0
  %213 = vmatpush1.msra.mxu0 0.0
  %214 = vmatprep.subr.mxu0 0.0
  %215 = vmatpush1.msra.mxu0 0.0
  %216 = vmatprep.subr.mxu0 0.0
  %217 = vmatpush1.msra.mxu0 0.0
  %218 = vmatprep.subr.mxu0 0.0
  %219 = vmatpush1.msra.mxu0 0.0
  %220 = vmatprep.subr.mxu0 0.0
  %221 = vmatpush1.msra.mxu0 0.0
  %222 = vmatprep.subr.mxu0 0.0
  %223 = vmatpush1.msra.mxu0 0.0
  %224 = vmatprep.subr.mxu0 0.0
  %225 = vmatpush1.msra.mxu0 0.0
  %226 = vmatprep.subr.mxu0 0.0
  %227 = vmatpush1.msra.mxu0 0.0
  %228 = vmatprep.subr.mxu0 0.0
  %229 = vmatpush1.msra.mxu0 0.0
  %230 = vmatprep.subr.mxu0 0.0
  %231 = vmatpush1.msra.mxu0 0.0
  %232 = vmatprep.subr.mxu0 0.0
  %233 = vmatpush1.msra.mxu0 0.0
  %234 = vmatprep.subr.mxu0 0.0
  %235 = vmatpush1.msra.mxu0 0.0
  %236 = vmatprep.subr.mxu0 0.0
  %237 = vmatpush1.msra.mxu0 0.0
  %238 = vmatprep.subr.mxu0 0.0
  %239 = vmatpush1.msra.mxu0 0.0
  %240 = vmatprep.subr.mxu0 0.0
  %241 = vmatpush1.msra.mxu0 0.0
  %242 = vmatprep.subr.mxu0 0.0
  %243 = vmatpush1.msra.mxu0 0.0
  %244 = vmatprep.subr.mxu0 0.0
  %245 = vmatpush1.msra.mxu0 0.0
  %246 = vmatprep.subr.mxu0 0.0
  %247 = vmatpush1.msra.mxu0 0.0
  %248 = vmatprep.subr.mxu0 0.0
  %249 = vmatpush1.msra.mxu0 0.0
  %250 = vmatprep.mubr.f32.mxu0 0.0
  %251 = vmatmul.mubr.f32.gmra.mrb[0].mxu0 %v184
  %v252 = vpop.f32.mrb[0].mxu0
  %v253 = vadd.f32 %v180, %v252
  %v254 = vpop.f32.mrb[0].mxu0
  %255 = vdwg.mxu0
  %v256 = vtanh.pop %v253
  %v257 = vxor.u32 %v253, 2147483648
  %v258 = vmul.f32 %v257, 1.442695
  %v259 = vpow.pop %v258
  %v260 = vadd.f32 %v259, 1.0
  %v261 = vrcp.pop %v260
  %v262 = vmul.f32 1.0, %v261
  %v263 = vsel %vm125, %v256, %v262
  %265 = vrot.lane.b32.xlu0 %v166, 32
  %v266 = vpop.permute.xlu0 %265
  %v268 = vmul.f32 %v263, %v266
  %270 = vrot.lane.b32.xlu0 %v263, 64
  %v271 = vpop.permute.xlu0 %270
  %v273 = vmul.f32 %v263, %v271
  %275 = vrot.lane.b32.xlu0 %v273, 32
  %v276 = vpop.permute.xlu0 %275
  %v278 = vadd.f32 %v268, %v276
  %v279 = vtanh.pop %v278
  %281 = vrot.lane.b32.xlu0 %v279, 64
  %v282 = vpop.permute.xlu0 %281
  %v284 = vmul.f32 %v263, %v282
  %286 = vrot.lane.b32.xlu0 %v284, 64
  %v287 = vpop.permute.xlu0 %286
  %290 = vrot.lane.b32.xlu0 %v148, 32
  %v291 = vpop.permute.xlu0 %290
  %294 = vrot.lane.b32.xlu0 %v278, 64
  %v295 = vpop.permute.xlu0 %294
  %v297 = vsel %vm164, %v158, %v287
  %v298 = vsel %vm182, %v297, %v291
  %vm299 = vcmask 785408
  %v300 = vsel %vm299, %v298, %v295
  %301 = vst [vmem:[%s8] sm:$0xff] %v300
  // Predicated region
  $region34: #{_encoder_lstm_forward.1} parent=0 // pred_check
    _
  $region35: #{_encoder_lstm_forward.1} parent=0 // pred_check_branch
    %303 = sbr.rel (0) target = $region37
  $region36: #{_encoder_lstm_forward.1} parent=0 // pred_region
    _
  $region37: #{_encoder_lstm_forward.1} parent=0 // pred_fallthru
    _
  // Predicated region
  $region38: #{_encoder_lstm_forward.1} parent=0 // pred_check
    _
  $region39: #{_encoder_lstm_forward.1} parent=0 // pred_check_branch
    %305 = sbr.rel (0) target = $region41
  $region40: #{_encoder_lstm_forward.1} parent=0 // pred_region
    _
  $region41: #{_encoder_lstm_forward.1} parent=0 // pred_fallthru
    _

</llo_original>
